<compile_context>
chip_gen: v6e
topology: v6e:2x2x1
jax: 0.10.0
libtpu: 0.0.40
codegen_flags: <defaults>
</compile_context>

<pallas_src>
import functools

import numpy as np
import jax
import jax.numpy as jnp
from jax.experimental import pallas as pl
from jax.experimental.pallas import tpu as pltpu


def _ohem_ce_kernel(x_ref, lab_ref, loss_ref, cnt_ref, sum_ref, *,
                    ignore_lb: int, thresh_v: float, hw: int, tile_hw: int):
    # x_ref:    (1, C, TH)  logits tile (classes on sublanes, pixels on lanes)
    # lab_ref:  (1, 1, TH)  int32 labels tile
    # loss_ref: (1, 1, TH)  f32 per-pixel CE loss (0 where ignored / out of range)
    # cnt_ref:  (1, 8, 128) int32 partial: #(loss > thresh_v) in this tile (at [0,0,0])
    # sum_ref:  (1, 8, 128) f32   partial: sum(loss where > thresh_v)       (at [0,0,0])
    t = pl.program_id(1)

    x = x_ref[...].astype(jnp.float32)       # upcast: LSE stays f32 even for bf16 input
    lab = lab_ref[...]                        # (1, 1, TH)

    # numerically stable log-sum-exp over the class (sublane) axis
    m = jnp.max(x, axis=1, keepdims=True)                               # (1, 1, TH)
    lse = m + jnp.log(jnp.sum(jnp.exp(x - m), axis=1, keepdims=True))   # (1, 1, TH)

    # gather logit at the label index via a one-hot built from a class iota
    # (kept on VPU/XLU on purpose: C << 128, MXU would be badly under-filled)
    cls = jax.lax.broadcasted_iota(jnp.int32, x.shape, 1)               # (1, C, TH)
    picked = jnp.sum(jnp.where(cls == lab, x, 0.0), axis=1, keepdims=True)

    # ragged-tail mask: last tile of the row may extend past HW (Pallas clips the
    # write-back, but out-of-range lanes must not pollute the fused reductions)
    lane = jax.lax.broadcasted_iota(jnp.int32, lab.shape, 2)            # (1, 1, TH)
    in_range = (t * tile_hw + lane) < hw

    valid = in_range & (lab != ignore_lb)
    loss = jnp.where(valid, lse - picked, 0.0)
    loss_ref[...] = loss                                                # lane-dense store

    # fused OHEM threshold partials.  All *real* pixels participate in the
    # comparison (ignored pixels carry loss 0, exactly like PyTorch's sorted-in
    # zeros); only the padded tail lanes are excluded.
    sel = in_range & (loss > thresh_v)
    cnt = jnp.sum(sel.astype(jnp.int32))
    ssum = jnp.sum(jnp.where(sel, loss, 0.0))

    sub = jax.lax.broadcasted_iota(jnp.int32, cnt_ref.shape, 1)
    ln = jax.lax.broadcasted_iota(jnp.int32, cnt_ref.shape, 2)
    first = (sub == 0) & (ln == 0)
    cnt_ref[...] = jnp.where(first, cnt, 0)
    sum_ref[...] = jnp.where(first, ssum, 0.0)


def ohem_ce_loss(logits, labels, *, thresh: float, n_min: int, ignore_lb: int = 255,
                 max_tile_hw: int = 8192):
    """JAX/Pallas equivalent of OhemCELoss.forward.

    logits: (N, C, H, W) float32 or bfloat16 (bf16 halves HBM traffic; kernel upcasts)
    labels: (N, H, W)    integer
    """
    N, C, H, W = logits.shape
    HW = H * W
    P = N * HW
    # PyTorch would index-error if n_min >= P; JAX clamps gathers, so assert here.
    assert 0 <= n_min < P, "n_min must be smaller than the number of pixels"

    # lane-dense layout straight from NCHW (free reshape, no wrapper transpose)
    x = logits.reshape(N, C, HW)
    if labels.dtype != jnp.int32:
        labels = labels.astype(jnp.int32)  # feed int32 from the pipeline to avoid this cast
    lab = labels.reshape(N, 1, HW)

    # Big lane-dense pixel tiles.  Per-block footprint ~ (C + 2) * tile_hw * 4 B
    # double-buffered — well under every chip's scoped-VMEM default at 8192.
    def _round128(v):
        return ((v + 127) // 128) * 128

    if N == 1:
        # v7x has 2 TensorCores: make sure the grid has >= 2 programs.
        tile_hw = min(max_tile_hw, _round128(pl.cdiv(HW, 2)))
    else:
        tile_hw = min(max_tile_hw, _round128(HW))
    T = pl.cdiv(HW, tile_hw)

    thresh_v = float(-np.log(np.float32(thresh)))

    kernel = functools.partial(_ohem_ce_kernel, ignore_lb=ignore_lb,
                               thresh_v=thresh_v, hw=HW, tile_hw=tile_hw)

    loss, cnt_part, sum_part = pl.pallas_call(
        kernel,
        out_shape=(
            jax.ShapeDtypeStruct((N, 1, HW), jnp.float32),       # per-pixel loss
            jax.ShapeDtypeStruct((N, 8, T * 128), jnp.int32),     # per-tile count partials
            jax.ShapeDtypeStruct((N, 8, T * 128), jnp.float32),   # per-tile sum partials
        ),
        grid=(N, T),
        in_specs=[
            pl.BlockSpec((1, C, tile_hw), lambda n, t: (n, 0, t)),
            pl.BlockSpec((1, 1, tile_hw), lambda n, t: (n, 0, t)),
        ],
        out_specs=(
            pl.BlockSpec((1, 1, tile_hw), lambda n, t: (n, 0, t)),
            pl.BlockSpec((1, 8, 128), lambda n, t: (n, 0, t)),
            pl.BlockSpec((1, 8, 128), lambda n, t: (n, 0, t)),
        ),
        compiler_params=pltpu.CompilerParams(
            dimension_semantics=("parallel", "parallel")),
    )(x, lab)

    # Tiny reductions over N*T partials (everything but [0,0,0] per tile is zero).
    cnt = jnp.sum(cnt_part)            # exact int32 count of loss > thresh_v
    sum_sel = jnp.sum(sum_part)        # f32 sum of losses above the threshold
    loss_flat = loss.reshape(-1)       # (P,) — only read on the fallback path

    # sorted_desc[n_min] > thresh_v  <=>  count(loss > thresh_v) >= n_min + 1
    def _thresholded():
        return sum_sel / cnt.astype(jnp.float32)

    def _topk_fallback():
        # Rare path: mean of the n_min largest losses (PyTorch's loss[:n_min]).
        topk, _ = jax.lax.top_k(loss_flat, n_min)
        return jnp.mean(topk)

    return jax.lax.cond(cnt >= n_min + 1, _thresholded, _topk_fallback)


def _reference(logits, labels, *, thresh, n_min, ignore_lb=255):
    """Pure-JAX reference mirroring the PyTorch module (for sanity check)."""
    N, C, H, W = logits.shape
    x = jnp.transpose(logits, (0, 2, 3, 1)).reshape(-1, C).astype(jnp.float32)
    lab = labels.reshape(-1)
    logp = jax.nn.log_softmax(x, axis=-1)
    safe_lab = jnp.where(lab == ignore_lb, 0, lab)
    nll = -jnp.take_along_axis(logp, safe_lab[:, None], axis=-1)[:, 0]
    loss = jnp.where(lab == ignore_lb, 0.0, nll)
    thresh_v = -jnp.log(jnp.float32(thresh))
    s = jnp.sort(loss)[::-1]
    if s[n_min] > thresh_v:
        sel = loss[loss > thresh_v]
    else:
        sel = s[:n_min]
    return jnp.mean(sel)


if __name__ == "__main__":
    key = jax.random.PRNGKey(0)
    N, C, H, W = 2, 4, 16, 16
    thresh = 0.7
    n_min = (N * H * W) // 16  # 32
    ignore_lb = 255

    k1, k2, k3 = jax.random.split(key, 3)
    logits = jax.random.normal(k1, (N, C, H, W), dtype=jnp.float32) * 2.0
    labels = jax.random.randint(k2, (N, H, W), 0, C, dtype=jnp.int32)
    # sprinkle some ignored pixels
    ignore_mask = jax.random.uniform(k3, (N, H, W)) < 0.1
    labels = jnp.where(ignore_mask, ignore_lb, labels)

    out = ohem_ce_loss(logits, labels, thresh=thresh, n_min=n_min, ignore_lb=ignore_lb)
    out = jax.block_until_ready(out)

    ref = _reference(logits, labels, thresh=thresh, n_min=n_min, ignore_lb=ignore_lb)
    assert jnp.allclose(out, ref, rtol=1e-5, atol=1e-5), (out, ref)

    print("KERNEL_OK")
</pallas_src>

<mosaic_0001>
module attributes {stable_mosaic.version = 11 : i64} {
  func.func @_ohem_ce_kernel(%arg0: i32, %arg1: i32, %arg2: memref<1x4x256xf32, #tpu.memory_space<vmem>>, %arg3: memref<1x1x256xi32, #tpu.memory_space<vmem>>, %arg4: memref<1x1x256xf32, #tpu.memory_space<vmem>>, %arg5: memref<1x8x128xi32, #tpu.memory_space<vmem>>, %arg6: memref<1x8x128xf32, #tpu.memory_space<vmem>>) attributes {dimension_semantics = [#tpu.dimension_semantics<parallel>, #tpu.dimension_semantics<parallel>], iteration_bounds = array<i64: 2, 1>, scalar_prefetch = 0 : i64, scratch_operands = 0 : i64, tpu.core_type = #tpu.core_type<tc>, window_params = [{transform_indices = @transform_0, window_bounds = array<i64: 1, 4, 256>}, {transform_indices = @transform_1, window_bounds = array<i64: 1, 1, 256>}, {transform_indices = @transform_2, window_bounds = array<i64: 1, 1, 256>}, {transform_indices = @transform_3, window_bounds = array<i64: 1, 8, 128>}, {transform_indices = @transform_4, window_bounds = array<i64: 1, 8, 128>}]} {
    %c0 = arith.constant 0 : index
    %c0_0 = arith.constant 0 : index
    %c0_1 = arith.constant 0 : index
    %0 = vector.load %arg2[%c0, %c0_0, %c0_1] : memref<1x4x256xf32, #tpu.memory_space<vmem>>, vector<1x4x256xf32>
    %c0_2 = arith.constant 0 : index
    %c0_3 = arith.constant 0 : index
    %c0_4 = arith.constant 0 : index
    %1 = vector.load %arg3[%c0_2, %c0_3, %c0_4] : memref<1x1x256xi32, #tpu.memory_space<vmem>>, vector<1x1x256xi32>
    %cst = arith.constant dense<0xFF800000> : vector<1x256xf32>
    %2 = vector.multi_reduction <maximumf>, %0, %cst [1] : vector<1x4x256xf32> to vector<1x256xf32>
    %3 = vector.shape_cast %2 : vector<1x256xf32> to vector<1x1x256xf32>
    %4 = vector.broadcast %3 : vector<1x1x256xf32> to vector<1x4x256xf32>
    %5 = arith.subf %0, %4 : vector<1x4x256xf32>
    %6 = math.exp %5 : vector<1x4x256xf32>
    %cst_5 = arith.constant dense<0.000000e+00> : vector<1x256xf32>
    %7 = vector.multi_reduction <add>, %6, %cst_5 [1] : vector<1x4x256xf32> to vector<1x256xf32>
    %8 = vector.shape_cast %7 : vector<1x256xf32> to vector<1x1x256xf32>
    %9 = math.log %8 : vector<1x1x256xf32>
    %10 = arith.addf %3, %9 : vector<1x1x256xf32>
    %11 = tpu.iota {dimensions = array<i32: 1>} : vector<1x4x256xi32>
    %12 = vector.broadcast %1 : vector<1x1x256xi32> to vector<1x4x256xi32>
    %13 = arith.cmpi eq, %11, %12 : vector<1x4x256xi32>
    %cst_6 = arith.constant 0.000000e+00 : f32
    %14 = vector.broadcast %cst_6 : f32 to vector<1x4x256xf32>
    %15 = arith.select %13, %0, %14 : vector<1x4x256xi1>, vector<1x4x256xf32>
    %cst_7 = arith.constant dense<0.000000e+00> : vector<1x256xf32>
    %16 = vector.multi_reduction <add>, %15, %cst_7 [1] : vector<1x4x256xf32> to vector<1x256xf32>
    %17 = vector.shape_cast %16 : vector<1x256xf32> to vector<1x1x256xf32>
    %18 = tpu.iota {dimensions = array<i32: 2>} : vector<1x1x256xi32>
    %c256_i32 = arith.constant 256 : i32
    %19 = arith.muli %arg1, %c256_i32 : i32
    %20 = vector.broadcast %19 : i32 to vector<1x1x256xi32>
    %21 = arith.addi %20, %18 : vector<1x1x256xi32>
    %c256_i32_8 = arith.constant 256 : i32
    %22 = vector.broadcast %c256_i32_8 : i32 to vector<1x1x256xi32>
    %23 = arith.cmpi slt, %21, %22 : vector<1x1x256xi32>
    %c255_i32 = arith.constant 255 : i32
    %24 = vector.broadcast %c255_i32 : i32 to vector<1x1x256xi32>
    %25 = arith.cmpi ne, %1, %24 : vector<1x1x256xi32>
    %26 = arith.andi %23, %25 : vector<1x1x256xi1>
    %27 = arith.subf %10, %17 : vector<1x1x256xf32>
    %cst_9 = arith.constant 0.000000e+00 : f32
    %28 = vector.broadcast %cst_9 : f32 to vector<1x1x256xf32>
    %29 = arith.select %26, %27, %28 : vector<1x1x256xi1>, vector<1x1x256xf32>
    %c0_10 = arith.constant 0 : index
    %c0_11 = arith.constant 0 : index
    %c0_12 = arith.constant 0 : index
    %30 = vector.load %arg4[%c0_10, %c0_11, %c0_12] : memref<1x1x256xf32, #tpu.memory_space<vmem>>, vector<1x1x256xf32>
    tpu.vector_store %arg4[%c0_10, %c0_11, %c0_12], %29 {strides = array<i32>} : memref<1x1x256xf32, #tpu.memory_space<vmem>>, vector<1x1x256xf32>,
    %cst_13 = arith.constant 0.356674939 : f32
    %31 = vector.broadcast %cst_13 : f32 to vector<1x1x256xf32>
    %32 = arith.cmpf ogt, %29, %31 : vector<1x1x256xf32>
    %33 = arith.andi %23, %32 : vector<1x1x256xi1>
    %34 = arith.extui %33 : vector<1x1x256xi1> to vector<1x1x256xi32>
    %35 = vector.shape_cast %34 : vector<1x1x256xi32> to vector<1x1x1x256xi32>
    %cst_14 = arith.constant dense<0> : vector<1xi32>
    %36 = vector.multi_reduction <add>, %35, %cst_14 [1, 2, 3] : vector<1x1x1x256xi32> to vector<1xi32>
    %37 = vector.shape_cast %36 : vector<1xi32> to vector<1x1x1x1xi32>
    %38 = vector.extract %37[0, 0, 0, 0] : i32 from vector<1x1x1x1xi32>
    %cst_15 = arith.constant 0.000000e+00 : f32
    %39 = vector.broadcast %cst_15 : f32 to vector<1x1x256xf32>
    %40 = arith.select %33, %29, %39 : vector<1x1x256xi1>, vector<1x1x256xf32>
    %41 = vector.shape_cast %40 : vector<1x1x256xf32> to vector<1x1x1x256xf32>
    %cst_16 = arith.constant dense<0.000000e+00> : vector<1xf32>
    %42 = vector.multi_reduction <add>, %41, %cst_16 [1, 2, 3] : vector<1x1x1x256xf32> to vector<1xf32>
    %43 = vector.shape_cast %42 : vector<1xf32> to vector<1x1x1x1xf32>
    %44 = vector.extract %43[0, 0, 0, 0] : f32 from vector<1x1x1x1xf32>
    %45 = tpu.iota {dimensions = array<i32: 1>} : vector<1x8x128xi32>
    %46 = tpu.iota {dimensions = array<i32: 2>} : vector<1x8x128xi32>
    %c0_i32 = arith.constant 0 : i32
    %47 = vector.broadcast %c0_i32 : i32 to vector<1x8x128xi32>
    %48 = arith.cmpi eq, %45, %47 : vector<1x8x128xi32>
    %c0_i32_17 = arith.constant 0 : i32
    %49 = vector.broadcast %c0_i32_17 : i32 to vector<1x8x128xi32>
    %50 = arith.cmpi eq, %46, %49 : vector<1x8x128xi32>
    %51 = arith.andi %48, %50 : vector<1x8x128xi1>
    %c0_i32_18 = arith.constant 0 : i32
    %52 = vector.broadcast %38 : i32 to vector<1x8x128xi32>
    %53 = vector.broadcast %c0_i32_18 : i32 to vector<1x8x128xi32>
    %54 = arith.select %51, %52, %53 : vector<1x8x128xi1>, vector<1x8x128xi32>
    %c0_19 = arith.constant 0 : index
    %c0_20 = arith.constant 0 : index
    %c0_21 = arith.constant 0 : index
    %55 = vector.load %arg5[%c0_19, %c0_20, %c0_21] : memref<1x8x128xi32, #tpu.memory_space<vmem>>, vector<1x8x128xi32>
    tpu.vector_store %arg5[%c0_19, %c0_20, %c0_21], %54 {strides = array<i32>} : memref<1x8x128xi32, #tpu.memory_space<vmem>>, vector<1x8x128xi32>,
    %cst_22 = arith.constant 0.000000e+00 : f32
    %56 = vector.broadcast %44 : f32 to vector<1x8x128xf32>
    %57 = vector.broadcast %cst_22 : f32 to vector<1x8x128xf32>
    %58 = arith.select %51, %56, %57 : vector<1x8x128xi1>, vector<1x8x128xf32>
    %c0_23 = arith.constant 0 : index
    %c0_24 = arith.constant 0 : index
    %c0_25 = arith.constant 0 : index
    %59 = vector.load %arg6[%c0_23, %c0_24, %c0_25] : memref<1x8x128xf32, #tpu.memory_space<vmem>>, vector<1x8x128xf32>
    tpu.vector_store %arg6[%c0_23, %c0_24, %c0_25], %58 {strides = array<i32>} : memref<1x8x128xf32, #tpu.memory_space<vmem>>, vector<1x8x128xf32>,
    return
  }
  func.func @transform_0(%arg0: i32, %arg1: i32) -> (i32, i32, i32) {
    %c0_i32 = arith.constant 0 : i32
    %c0_i32_0 = arith.constant 0 : i32
    return %arg0, %c0_i32, %arg1 : i32, i32, i32
  }
  func.func @transform_1(%arg0: i32, %arg1: i32) -> (i32, i32, i32) {
    %c0_i32 = arith.constant 0 : i32
    %c0_i32_0 = arith.constant 0 : i32
    return %arg0, %c0_i32, %arg1 : i32, i32, i32
  }
  func.func @transform_2(%arg0: i32, %arg1: i32) -> (i32, i32, i32) {
    %c0_i32 = arith.constant 0 : i32
    %c0_i32_0 = arith.constant 0 : i32
    return %arg0, %c0_i32, %arg1 : i32, i32, i32
  }
  func.func @transform_3(%arg0: i32, %arg1: i32) -> (i32, i32, i32) {
    %c0_i32 = arith.constant 0 : i32
    %c0_i32_0 = arith.constant 0 : i32
    return %arg0, %c0_i32, %arg1 : i32, i32, i32
  }
  func.func @transform_4(%arg0: i32, %arg1: i32) -> (i32, i32, i32) {
    %c0_i32 = arith.constant 0 : i32
    %c0_i32_0 = arith.constant 0 : i32
    return %arg0, %c0_i32, %arg1 : i32, i32, i32
  }
}

</mosaic_0001>

<llo_original>
// kernel: tpu_custom_call.1
$region0: #{tpu_custom_call.1}
  #allocation0 [shape = 'u32[]', space=smem, size = 0x4, offset = 0x4, fixed_abs, tag = 'smem constant byte address 0x4 - core index']
  #allocation1 [shape = 'u32[144,128]{1,0:T(1,128)}', space=vmem, size = 0x12000, scoped, tag = 'internal scratch']
  %s0 = inlined_call_operand.hbm [shape: f32[2,4,256], index: 0, kind: input, shape index: {}]
  %s1 = inlined_call_operand.hbm [shape: s32[2,1,256], index: 1, kind: input, shape index: {}]
  %s2 = inlined_call_operand.hbm [shape: f32[2,1,256], index: 2, kind: output, shape index: {0}]
  %s3 = inlined_call_operand.hbm [shape: s32[2,8,128], index: 3, kind: output, shape index: {1}]
  %s4 = inlined_call_operand.hbm [shape: f32[2,8,128], index: 4, kind: output, shape index: {2}]
  %5 = xla_tuple %s2, %s3, %s4
  %s6 = sld [smem:[#allocation0]]
  $region65: #{tpu_custom_call.1} parent=0
    _
  %s8 = ssub.s32 1, %s6
  %s9 = scalar_select 0, %s8, %s6
  $region1: #{tpu_custom_call.1} parent=0
    #allocation2 [shape = 'u8[8192]{0}', space=vmem, size = 0x2000, scoped, tag = 'input window, operand 0']
    #allocation3 [shape = 's32[2]{0}', space=sflag, size = 0x8, scoped, tag = 'scoped memory for tpu_custom_call.1']
    #allocation4 [shape = 's32[2]{0}', space=sflag, size = 0x8, scoped, tag = 'scoped memory for tpu_custom_call.1']
    #allocation5 [shape = 'u8[2048]{0}', space=vmem, size = 0x800, scoped, tag = 'input window, operand 1']
    #allocation6 [shape = 's32[2]{0}', space=sflag, size = 0x8, scoped, tag = 'scoped memory for tpu_custom_call.1']
    #allocation7 [shape = 'u8[2048]{0}', space=vmem, size = 0x800, scoped, tag = 'output window, operand 0']
    #allocation8 [shape = 'u8[8192]{0}', space=vmem, size = 0x2000, scoped, tag = 'output window, operand 1']
    #allocation9 [shape = 's32[2]{0}', space=sflag, size = 0x8, scoped, tag = 'scoped memory for tpu_custom_call.1']
    #allocation10 [shape = 'u8[8192]{0}', space=vmem, size = 0x2000, scoped, tag = 'output window, operand 2']
    %10 = vsyncpa [#allocation3], 0
    %s11 = scalar_lea.sflag [#allocation3], 1
    %12 = vsyncpa %s11, 0
    %13 = vsyncpa [#allocation6], 0
    %s14 = scalar_lea.sflag [#allocation6], 1
    %15 = vsyncpa %s14, 0
    %16 = vsyncpa [#allocation4], 0
    %s17 = scalar_lea.sflag [#allocation4], 1
    %18 = vsyncpa %s17, 0
    %19 = vsyncpa [#allocation9], 0
    %s20 = scalar_lea.sflag [#allocation9], 1
    %21 = vsyncpa %s20, 0
    loop: start=0, step=1, limit=4
    $region2: #{tpu_custom_call.1} parent=1 // loop_pre_header
      _
    $region3: #{tpu_custom_call.1} parent=1 // loop_header
      %s23 = sphi 0, %s27
      %p24 = scmp.ge.s32.totalorder %s23, 4
      %s30 = sphi 0, %s42
      %s31 = sphi 0, %s38
      %s32 = sphi 0, %s30
      %s33 = sphi 0, %s31
      %s34 = sphi 0, %s32
      %s35 = sphi 0, %s33
      %s47 = sphi 0, %s49
      %s50 = sphi 0, %s47
      %s51 = sphi 0, %s50
      %s67 = sphi 0, %s51
      %s75 = sphi 0, %s77
      %s78 = sphi 0, %s75
      %s79 = sphi 0, %s78
      %s95 = sphi 0, %s79
      %s103 = sphi 0, %s105
      %s106 = sphi 0, %s103
      %s107 = sphi 0, %s106
      %s123 = sphi 0, %s107
      %s131 = sphi 0, %s133
      %s134 = sphi 0, %s131
      %s135 = sphi 0, %s134
      %s151 = sphi 0, %s135
      %s159 = sphi 0, %s161
      %s162 = sphi 0, %s159
      %s163 = sphi 0, %s162
      %s179 = sphi 0, %s163
    $region4: #{tpu_custom_call.1} parent=1 // loop_header_branch
      %26 = sbr.rel (%p24) target = $region8
    $region5: #{tpu_custom_call.1} parent=1 // loop_body
      %s28 = ssub.s32 %s23, 1
      %s29 = ssub.s32 %s23, 2
      %s36 = sadd.s32 1, %s31
      %p37 = scmp.ge.s32.totalorder %s36, 1
      %s38 = scalar_select %p37, 0, %s36
      %s39 = sadd.s32 1, %s30
      %s40 = scalar_select %p37, %s39, %s30
      %p41 = scmp.ge.s32.totalorder %s40, 2
      %s42 = scalar_select %p41, 0, %s40
      %s43 = ssub.s32 %s30, %s42
      %s44 = ssub.s32 %s31, %s38
      %s45 = sor.u32 %s43, %s44
      %p46 = scmp.eq.s32.totalorder %s45, 0
      %s48 = sadd.s32 %s47, 1
      %s49 = scalar_select %p46, %s47, %s48
      %p52 = pneg %p46
      %p53 = scmp.eq.s32.totalorder %s23, 1
      %p54 = por %p52, %p53
      %p55 = scmp.ne.s32.totalorder %s47, %s50
      %p56 = scmp.eq.s32.totalorder %s23, 0
      %p57 = por %p55, %p56
      %p58 = scmp.ne.s32.totalorder %s47, %s50
      %p59 = scmp.eq.s32.totalorder %s28, 1
      %p60 = por %p58, %p59
      %p61 = scmp.ne.s32.totalorder %s50, %s51
      %p62 = scmp.eq.s32.totalorder %s28, 0
      %p63 = por %p61, %p62
      %p64 = scmp.ne.s32.totalorder %s50, %s51
      %p65 = scmp.eq.s32.totalorder %s29, 1
      %p66 = por %p64, %p65
      %p68 = scmp.ne.s32.totalorder %s51, %s67
      %p69 = scmp.eq.s32.totalorder %s29, 0
      %p70 = por %p68, %p69
      %s71 = ssub.s32 %s30, %s42
      %s72 = ssub.s32 %s31, %s38
      %s73 = sor.u32 %s71, %s72
      %p74 = scmp.eq.s32.totalorder %s73, 0
      %s76 = sadd.s32 %s75, 1
      %s77 = scalar_select %p74, %s75, %s76
      %p80 = pneg %p74
      %p81 = scmp.eq.s32.totalorder %s23, 1
      %p82 = por %p80, %p81
      %p83 = scmp.ne.s32.totalorder %s75, %s78
      %p84 = scmp.eq.s32.totalorder %s23, 0
      %p85 = por %p83, %p84
      %p86 = scmp.ne.s32.totalorder %s75, %s78
      %p87 = scmp.eq.s32.totalorder %s28, 1
      %p88 = por %p86, %p87
      %p89 = scmp.ne.s32.totalorder %s78, %s79
      %p90 = scmp.eq.s32.totalorder %s28, 0
      %p91 = por %p89, %p90
      %p92 = scmp.ne.s32.totalorder %s78, %s79
      %p93 = scmp.eq.s32.totalorder %s29, 1
      %p94 = por %p92, %p93
      %p96 = scmp.ne.s32.totalorder %s79, %s95
      %p97 = scmp.eq.s32.totalorder %s29, 0
      %p98 = por %p96, %p97
      %s99 = ssub.s32 %s30, %s42
      %s100 = ssub.s32 %s31, %s38
      %s101 = sor.u32 %s99, %s100
      %p102 = scmp.eq.s32.totalorder %s101, 0
      %s104 = sadd.s32 %s103, 1
      %s105 = scalar_select %p102, %s103, %s104
      %p108 = pneg %p102
      %p109 = scmp.eq.s32.totalorder %s23, 1
      %p110 = por %p108, %p109
      %p111 = scmp.ne.s32.totalorder %s103, %s106
      %p112 = scmp.eq.s32.totalorder %s23, 0
      %p113 = por %p111, %p112
      %p114 = scmp.ne.s32.totalorder %s103, %s106
      %p115 = scmp.eq.s32.totalorder %s28, 1
      %p116 = por %p114, %p115
      %p117 = scmp.ne.s32.totalorder %s106, %s107
      %p118 = scmp.eq.s32.totalorder %s28, 0
      %p119 = por %p117, %p118
      %p120 = scmp.ne.s32.totalorder %s106, %s107
      %p121 = scmp.eq.s32.totalorder %s29, 1
      %p122 = por %p120, %p121
      %p124 = scmp.ne.s32.totalorder %s107, %s123
      %p125 = scmp.eq.s32.totalorder %s29, 0
      %p126 = por %p124, %p125
      %s127 = ssub.s32 %s30, %s42
      %s128 = ssub.s32 %s31, %s38
      %s129 = sor.u32 %s127, %s128
      %p130 = scmp.eq.s32.totalorder %s129, 0
      %s132 = sadd.s32 %s131, 1
      %s133 = scalar_select %p130, %s131, %s132
      %p136 = pneg %p130
      %p137 = scmp.eq.s32.totalorder %s23, 1
      %p138 = por %p136, %p137
      %p139 = scmp.ne.s32.totalorder %s131, %s134
      %p140 = scmp.eq.s32.totalorder %s23, 0
      %p141 = por %p139, %p140
      %p142 = scmp.ne.s32.totalorder %s131, %s134
      %p143 = scmp.eq.s32.totalorder %s28, 1
      %p144 = por %p142, %p143
      %p145 = scmp.ne.s32.totalorder %s134, %s135
      %p146 = scmp.eq.s32.totalorder %s28, 0
      %p147 = por %p145, %p146
      %p148 = scmp.ne.s32.totalorder %s134, %s135
      %p149 = scmp.eq.s32.totalorder %s29, 1
      %p150 = por %p148, %p149
      %p152 = scmp.ne.s32.totalorder %s135, %s151
      %p153 = scmp.eq.s32.totalorder %s29, 0
      %p154 = por %p152, %p153
      %s155 = ssub.s32 %s30, %s42
      %s156 = ssub.s32 %s31, %s38
      %s157 = sor.u32 %s155, %s156
      %p158 = scmp.eq.s32.totalorder %s157, 0
      %s160 = sadd.s32 %s159, 1
      %s161 = scalar_select %p158, %s159, %s160
      %p164 = pneg %p158
      %p165 = scmp.eq.s32.totalorder %s23, 1
      %p166 = por %p164, %p165
      %p167 = scmp.ne.s32.totalorder %s159, %s162
      %p168 = scmp.eq.s32.totalorder %s23, 0
      %p169 = por %p167, %p168
      %p170 = scmp.ne.s32.totalorder %s159, %s162
      %p171 = scmp.eq.s32.totalorder %s28, 1
      %p172 = por %p170, %p171
      %p173 = scmp.ne.s32.totalorder %s162, %s163
      %p174 = scmp.eq.s32.totalorder %s28, 0
      %p175 = por %p173, %p174
      %p176 = scmp.ne.s32.totalorder %s162, %s163
      %p177 = scmp.eq.s32.totalorder %s29, 1
      %p178 = por %p176, %p177
      %p180 = scmp.ne.s32.totalorder %s163, %s179
      %p181 = scmp.eq.s32.totalorder %s29, 0
      %p182 = por %p180, %p181
      %p183 = scmp.le.s32.totalorder 1, %s23
      %p184 = scmp.lt.s32.totalorder %s23, 3
      %p185 = pnand %p183, %p184
      %p186 = pneg %p185
      // Predicated region
      $region9: #{tpu_custom_call.1} parent=5 // pred_check
        _
      $region10: #{tpu_custom_call.1} parent=5 // pred_check_branch
        %188 = sbr.rel (%p185) target = $region12
      $region11: #{tpu_custom_call.1} parent=5 // pred_region
        %s189 = ssub.s32 %s23, 1
      $region12: #{tpu_custom_call.1} parent=5 // pred_fallthru
        _
      %p190 = scmp.lt.s32.totalorder %s23, 2
      // Predicated region
      $region13: #{tpu_custom_call.1} parent=5 // pred_check
        %p191 = pneg %p190
      $region14: #{tpu_custom_call.1} parent=5 // pred_check_branch
        %193 = sbr.rel (%p191) target = $region16
      $region15: #{tpu_custom_call.1} parent=5 // pred_region
        // Predicated region
        $region17: #{tpu_custom_call.1} parent=15 // pred_check
          %p194 = pneg %p57
        $region18: #{tpu_custom_call.1} parent=15 // pred_check_branch
          %196 = sbr.rel (%p194) target = $region20
        $region19: #{tpu_custom_call.1} parent=15 // pred_region
          %s197 = sand.u32 %s47, 1
          %s198 = scalar_lea.sflag [#allocation3], %s197
          %s199 = sand.u32 %s47, 1
          %s200 = smul.addr %s199, 8
          %s201 = scalar_lea.vmem [#allocation2], %s200
          %s202 = smul.u32 2, %s31
          %s204 = ssub.s32 128, 128
          %205 = vsyncadd %s198, %s204
          %s206 = smul.addr %s30, 2
          %s207 = sadd.s32 %s202, %s206
          %s208 = smul.addr %s207, 64
          %s209 = scalar_lea.hbm %s0, %s208
          %s211 = sshll.u32 %s201, 4
          %s212 = int_to_ptr.vmem [resolvable:$true] %s211
          %214 = dma.hbm_to_vmem [thread:$0]  %s209, 128, %s212, %s198
        $region20: #{tpu_custom_call.1} parent=15 // pred_fallthru
          _
        // Predicated region
        $region21: #{tpu_custom_call.1} parent=15 // pred_check
          %p215 = pneg %p85
        $region22: #{tpu_custom_call.1} parent=15 // pred_check_branch
          %217 = sbr.rel (%p215) target = $region24
        $region23: #{tpu_custom_call.1} parent=15 // pred_region
          %s218 = sand.u32 %s75, 1
          %s219 = scalar_lea.sflag [#allocation6], %s218
          %s220 = sand.u32 %s75, 1
          %s221 = smul.addr %s220, 2
          %s222 = scalar_lea.vmem [#allocation5], %s221
          %s223 = smul.u32 2, %s31
          %s225 = ssub.s32 32, 32
          %226 = vsyncadd %s219, %s225
          %s227 = smul.addr %s30, 2
          %s228 = sadd.s32 %s223, %s227
          %s229 = smul.addr %s228, 16
          %s230 = scalar_lea.hbm %s1, %s229
          %s232 = sshll.u32 %s222, 4
          %s233 = int_to_ptr.vmem [resolvable:$true] %s232
          %235 = dma.hbm_to_vmem [thread:$0]  %s230, 32, %s233, %s219
        $region24: #{tpu_custom_call.1} parent=15 // pred_fallthru
          _
      $region16: #{tpu_custom_call.1} parent=5 // pred_fallthru
        _
      %p236 = scmp.le.s32.totalorder 1, %s23
      %p237 = scmp.lt.s32.totalorder %s23, 3
      %p238 = pnand %p236, %p237
      %p239 = pneg %p238
      // Predicated region
      $region25: #{tpu_custom_call.1} parent=5 // pred_check
        _
      $region26: #{tpu_custom_call.1} parent=5 // pred_check_branch
        %241 = sbr.rel (%p238) target = $region28
      $region27: #{tpu_custom_call.1} parent=5 // pred_region
        %s242 = ssub.s32 %s23, 1
        %s243 = sand.u32 %s50, 1
        %s244 = scalar_lea.sflag [#allocation3], %s243
        %s245 = sand.u32 %s50, 1
        %s246 = smul.addr %s245, 8
        %s247 = scalar_lea.vmem [#allocation2], %s246
        // Predicated region
        $region29: #{tpu_custom_call.1} parent=27 // pred_check
          %p248 = pneg %p63
        $region30: #{tpu_custom_call.1} parent=27 // pred_check_branch
          %250 = sbr.rel (%p248) target = $region32
        $region31: #{tpu_custom_call.1} parent=27 // pred_region
          %251 = dma.done %s244, 128
        $region32: #{tpu_custom_call.1} parent=27 // pred_fallthru
          _
        %s252 = sand.u32 %s78, 1
        %s253 = scalar_lea.sflag [#allocation6], %s252
        %s254 = sand.u32 %s78, 1
        %s255 = smul.addr %s254, 2
        %s256 = scalar_lea.vmem [#allocation5], %s255
        // Predicated region
        $region33: #{tpu_custom_call.1} parent=27 // pred_check
          %p257 = pneg %p91
        $region34: #{tpu_custom_call.1} parent=27 // pred_check_branch
          %259 = sbr.rel (%p257) target = $region36
        $region35: #{tpu_custom_call.1} parent=27 // pred_region
          %260 = dma.done %s253, 32
        $region36: #{tpu_custom_call.1} parent=27 // pred_fallthru
          _
        %s261 = sand.u32 %s50, 1
        %s262 = scalar_lea.sflag [#allocation3], %s261
        %s263 = sand.u32 %s50, 1
        %s264 = smul.addr %s263, 8
        %s265 = scalar_lea.vmem [#allocation2], %s264
        %p266 = pneg %p63
        %p267 = pneg %p60
        %s268 = sand.u32 %s78, 1
        %s269 = scalar_lea.sflag [#allocation6], %s268
        %s270 = sand.u32 %s78, 1
        %s271 = smul.addr %s270, 2
        %s272 = scalar_lea.vmem [#allocation5], %s271
        %p273 = pneg %p91
        %p274 = pneg %p88
        %p275 = pneg %p119
        %p276 = pneg %p116
        %s277 = sand.u32 %s106, 1
        %s278 = scalar_lea.sflag [#allocation4], %s277
        %s279 = sand.u32 %s106, 1
        %s280 = smul.addr %s279, 2
        %s281 = scalar_lea.vmem [#allocation7], %s280
        %p282 = pneg %p147
        %p283 = pneg %p144
        %s284 = sand.u32 %s28, 1
        %s285 = scalar_lea.sflag [#allocation9], %s284
        %s286 = sand.u32 %s134, 1
        %s287 = smul.addr %s286, 8
        %s288 = scalar_lea.vmem [#allocation8], %s287
        %p289 = pneg %p175
        %p290 = pneg %p172
        %s291 = sand.u32 %s28, 1
        %s292 = scalar_lea.sflag [#allocation9], %s291
        %s293 = sand.u32 %s162, 1
        %s294 = smul.addr %s293, 8
        %s295 = scalar_lea.vmem [#allocation10], %s294
        %s296 = smul.u32 2, %s33
        %s297 = smul.u32 2, %s33
        %s298 = smul.u32 2, %s33
        %v299 = vld [vmem:[%s247] sm:$0xff]
        %v300 = vld [vmem:[%s256] sm:$0x3]
        %v302 = vcombine.high %v299, %v299
        %vm304 = vcmask 1043456
        %v305 = vsel %vm304, %v299, -inf
        %v306 = vrot.slane %v305, 4
        %v307 = vmax.f32 %v305, %v306
        %v308 = vrot.slane %v307, 2
        %v309 = vmax.f32 %v307, %v308
        %v310 = vrot.slane %v309, 1
        %v311 = vmax.f32 %v309, %v310
        %v312 = vsel %vm304, %v302, -inf
        %v313 = vrot.slane %v312, 4
        %v314 = vmax.f32 %v312, %v313
        %v315 = vrot.slane %v314, 2
        %v316 = vmax.f32 %v314, %v315
        %v317 = vrot.slane %v316, 1
        %v318 = vmax.f32 %v316, %v317
        %v321 = vcombine.low %v311, %v318
        %v323 = vsub.f32 %v299, %v321
        %v324 = vmul.f32 %v323, 1.442695
        %v325 = vpow.pop %v324
        %v327 = vcombine.high %v325, %v325
        %v329 = vsel %vm304, %v325, 0.0
        %v330 = vrot.slane %v329, 4
        %v331 = vadd.f32 %v329, %v330
        %v332 = vrot.slane %v331, 2
        %v333 = vadd.f32 %v331, %v332
        %v334 = vrot.slane %v333, 1
        %v335 = vadd.f32 %v333, %v334
        %v336 = vsel %vm304, %v327, 0.0
        %v337 = vrot.slane %v336, 4
        %v338 = vadd.f32 %v336, %v337
        %v339 = vrot.slane %v338, 2
        %v340 = vadd.f32 %v338, %v339
        %v341 = vrot.slane %v340, 1
        %v342 = vadd.f32 %v340, %v341
        %v343 = vlog2.pop %v335
        %v344 = vmul.f32 %v343, 0.6931472
        %v345 = vlog2.pop %v342
        %v346 = vmul.f32 %v345, 0.6931472
        %v347 = vadd.f32 %v311, %v344
        %v348 = vadd.f32 %v318, %v346
        %v349 = vlaneseq
        %v350 = vshrl.u32 %v349, 7
        %v351 = vlaneseq
        %v352 = vshrl.u32 %v351, 7
        %v353 = vsub.s32 0, %v352
        %v354 = vrot.slane %v300, %v353
        %v355 = vlaneseq
        %v356 = vshrl.u32 %v355, 7
        %v357 = vsub.s32 1, %v356
        %v358 = vrot.slane %v300, %v357
        %vm359 = vcmp.eq.s32.totalorder %v350, %v354
        %vm360 = vcmp.eq.s32.totalorder %v350, %v358
        %v361 = vsel %vm359, %v299, 0.0
        %v362 = vsel %vm360, %v302, 0.0
        %v363 = vsel %vm304, %v361, 0.0
        %v364 = vrot.slane %v363, 4
        %v365 = vadd.f32 %v363, %v364
        %v366 = vrot.slane %v365, 2
        %v367 = vadd.f32 %v365, %v366
        %v368 = vrot.slane %v367, 1
        %v369 = vadd.f32 %v367, %v368
        %v370 = vsel %vm304, %v362, 0.0
        %v371 = vrot.slane %v370, 4
        %v372 = vadd.f32 %v370, %v371
        %v373 = vrot.slane %v372, 2
        %v374 = vadd.f32 %v372, %v373
        %v375 = vrot.slane %v374, 1
        %v376 = vadd.f32 %v374, %v375
        %v377 = vlaneseq
        %v378 = vand.u32 %v377, 127
        %v379 = vadd.s32 %v378, 128
        %s380 = smul.u32 %s33, 256
        %v381 = vstv %s380
        %v382 = vadd.s32 %v381, %v378
        %v383 = vadd.s32 %v381, %v379
        %vm384 = vcmp.lt.s32.totalorder %v382, 256
        %vm385 = vcmp.lt.s32.totalorder %v383, 256
        %vm386 = vcmp.ne.s32.totalorder %v300, 255
        %v387 = vsel %vm386, 1, 0
        %v388 = vlaneseq
        %v389 = vshrl.u32 %v388, 7
        %v390 = vsub.s32 0, %v389
        %v391 = vrot.slane %v387, %v390
        %v392 = vlaneseq
        %v393 = vshrl.u32 %v392, 7
        %v394 = vsub.s32 1, %v393
        %v395 = vrot.slane %v387, %v394
        %vm396 = vcmp.ne.s32.totalorder %v391, 0
        %vm397 = vcmp.ne.s32.totalorder %v395, 0
        %vm398 = vmand %vm384, %vm396
        %vm399 = vmand %vm385, %vm397
        %v400 = vsub.f32 %v347, %v369
        %v401 = vsub.f32 %v348, %v376
        %v402 = vsel %vm398, %v400, 0.0
        %v403 = vsel %vm399, %v401, 0.0
        %v406 = vcombine.low %v402, %v403
        %v408 = vunpack.c.l.s4 1966171168
        %v409 = vunpack.c.0.s8 %v408
        %v410 = vlaneseq
        %v411 = vshrl.u32 %v410, 7
        %v412 = vsub.s32 %v409, %v411
        %v413 = vrot.slane %v406, %v412
        %v415 = vunpack.c.l.s4 1966171168
        %v416 = vunpack.c.0.s8 %v415
        %v417 = vlaneseq
        %v418 = vshrl.u32 %v417, 7
        %v419 = vsub.s32 %v416, %v418
        %v420 = vrot.slane %v413, %v419
        %v422 = vlaneseq
        %vm423 = vcmp.ge.s32.totalorder %v422, 0
        %vm424 = vcmp.lt.s32.totalorder %v422, 256
        %vm425 = vmand %vm423, %vm424
        %426 = vst.msk [vmem:[%s281] sm:$0x3] %vm425, %v420
        %vm427 = vcmp.gt.f32.partialorder %v402, 0.35667494
        %vm428 = vcmp.gt.f32.partialorder %v403, 0.35667494
        %vm429 = vmand %vm384, %vm427
        %vm430 = vmand %vm385, %vm428
        %v431 = vsel %vm429, 1, 0
        %v432 = vsel %vm430, 1, 0
        %vm433 = vcmask 1040384
        %v434 = vsel %vm433, %v431, 0
        %v435 = vsel %vm433, %v432, 0
        %v436 = vadd.s32 %v434, %v435
        %v437 = vand.u32 %v436, 65535
        %v438 = vshrl.u32 %v436, 16
        %v439 = vcvt.s32.f32 %v437
        %v440 = vcvt.s32.f32 %v438
        %441 = vadd.xlane.f32.xlu0 %v439
        %v442 = vpop.xlane.xlu0 %441
        %443 = vadd.xlane.f32.xlu0 %v440
        %v444 = vpop.xlane.xlu0 %443
        %v445 = vcvt.f32.s32 %v442
        %v446 = vcvt.f32.s32 %v444
        %v447 = vshll.u32 %v446, 16
        %v448 = vadd.s32 %v447, %v445
        %v449 = vrot.slane %v448, 4
        %v450 = vadd.s32 %v448, %v449
        %v451 = vrot.slane %v450, 2
        %v452 = vadd.s32 %v450, %v451
        %v453 = vrot.slane %v452, 1
        %v454 = vadd.s32 %v452, %v453
        %s455 = vtos %v454
        %v456 = vsel %vm429, %v402, 0.0
        %v457 = vsel %vm430, %v403, 0.0
        %v458 = vsel %vm433, %v456, 0.0
        %v459 = vsel %vm433, %v457, 0.0
        %v460 = vadd.f32 %v458, %v459
        %461 = vadd.xlane.f32.xlu0 %v460
        %v462 = vpop.xlane.xlu0 %461
        %v463 = vrot.slane %v462, 4
        %v464 = vadd.f32 %v462, %v463
        %v465 = vrot.slane %v464, 2
        %v466 = vadd.f32 %v464, %v465
        %v467 = vrot.slane %v466, 1
        %v468 = vadd.f32 %v466, %v467
        %s469 = vtos %v468
        %vm470 = vcmp.eq.s32.totalorder %v350, 0
        %vm471 = vcmp.eq.s32.totalorder %v378, 0
        %vm472 = vmand %vm470, %vm471
        %v473 = vstv %s455
        %v474 = vsel %vm472, %v473, 0
        %475 = vst [vmem:[%s288] sm:$0xff] %v474
        %v476 = vstv %s469
        %v477 = vsel %vm472, %v476, 0.0
        %478 = vst [vmem:[%s295] sm:$0xff] %v477
        %s479 = sand.u32 %s106, 1
        %s480 = scalar_lea.sflag [#allocation4], %s479
        %s481 = sand.u32 %s106, 1
        %s482 = smul.addr %s481, 2
        %s483 = scalar_lea.vmem [#allocation7], %s482
        %s484 = sand.u32 %s28, 1
        %s485 = scalar_lea.sflag [#allocation9], %s484
        %s486 = sand.u32 %s134, 1
        %s487 = smul.addr %s486, 8
        %s488 = scalar_lea.vmem [#allocation8], %s487
        %s489 = sand.u32 %s28, 1
        %s490 = scalar_lea.sflag [#allocation9], %s489
        %s491 = sand.u32 %s162, 1
        %s492 = smul.addr %s491, 8
        %s493 = scalar_lea.vmem [#allocation10], %s492
        // Predicated region
        $region37: #{tpu_custom_call.1} parent=27 // pred_check
          %p494 = pneg %p116
        $region38: #{tpu_custom_call.1} parent=27 // pred_check_branch
          %496 = sbr.rel (%p494) target = $region40
        $region39: #{tpu_custom_call.1} parent=27 // pred_region
          %s497 = smul.u32 2, %s33
          %s499 = ssub.s32 32, 32
          %500 = vsyncadd %s480, %s499
          %s501 = smul.addr %s32, 2
          %s502 = sadd.s32 %s497, %s501
          %s503 = smul.addr %s502, 16
          %s504 = scalar_lea.hbm %s2, %s503
          %s506 = sshll.u32 %s483, 4
          %s507 = int_to_ptr.vmem [resolvable:$true] %s506
          %509 = dma.vmem_to_hbm [thread:$0]  %s507, 32, %s504, %s480
        $region40: #{tpu_custom_call.1} parent=27 // pred_fallthru
          _
        // Predicated region
        $region41: #{tpu_custom_call.1} parent=27 // pred_check
          %p510 = pneg %p144
        $region42: #{tpu_custom_call.1} parent=27 // pred_check_branch
          %512 = sbr.rel (%p510) target = $region44
        $region43: #{tpu_custom_call.1} parent=27 // pred_region
          %s514 = ssub.s32 128, 128
          %515 = vsyncadd %s485, %s514
          %s516 = sadd.s32 %s33, %s32
          %s517 = smul.addr %s516, 128
          %s518 = scalar_lea.hbm %s3, %s517
          %s520 = sshll.u32 %s488, 4
          %s521 = int_to_ptr.vmem [resolvable:$true] %s520
          %523 = dma.vmem_to_hbm [thread:$0]  %s521, 128, %s518, %s485
        $region44: #{tpu_custom_call.1} parent=27 // pred_fallthru
          _
        // Predicated region
        $region45: #{tpu_custom_call.1} parent=27 // pred_check
          %p524 = pneg %p172
        $region46: #{tpu_custom_call.1} parent=27 // pred_check_branch
          %526 = sbr.rel (%p524) target = $region48
        $region47: #{tpu_custom_call.1} parent=27 // pred_region
          %s528 = ssub.s32 128, 128
          %529 = vsyncadd %s490, %s528
          %s530 = sadd.s32 %s33, %s32
          %s531 = smul.addr %s530, 128
          %s532 = scalar_lea.hbm %s4, %s531
          %s534 = sshll.u32 %s493, 4
          %s535 = int_to_ptr.vmem [resolvable:$true] %s534
          %537 = dma.vmem_to_hbm [thread:$0]  %s535, 128, %s532, %s490
        $region48: #{tpu_custom_call.1} parent=27 // pred_fallthru
          _
      $region28: #{tpu_custom_call.1} parent=5 // pred_fallthru
        _
      %p538 = scmp.le.s32.totalorder 2, %s23
      // Predicated region
      $region49: #{tpu_custom_call.1} parent=5 // pred_check
        %p539 = pneg %p538
      $region50: #{tpu_custom_call.1} parent=5 // pred_check_branch
        %541 = sbr.rel (%p539) target = $region52
      $region51: #{tpu_custom_call.1} parent=5 // pred_region
        %s542 = ssub.s32 %s23, 2
        // Predicated region
        $region53: #{tpu_custom_call.1} parent=51 // pred_check
          %p543 = pneg %p122
        $region54: #{tpu_custom_call.1} parent=51 // pred_check_branch
          %545 = sbr.rel (%p543) target = $region56
        $region55: #{tpu_custom_call.1} parent=51 // pred_region
          %s546 = sand.u32 %s107, 1
          %s547 = scalar_lea.sflag [#allocation4], %s546
          %s548 = sand.u32 %s107, 1
          %s549 = smul.addr %s548, 2
          %s550 = scalar_lea.vmem [#allocation7], %s549
          %551 = dma.done %s547, 32
        $region56: #{tpu_custom_call.1} parent=51 // pred_fallthru
          _
        // Predicated region
        $region57: #{tpu_custom_call.1} parent=51 // pred_check
          %p552 = pneg %p150
        $region58: #{tpu_custom_call.1} parent=51 // pred_check_branch
          %554 = sbr.rel (%p552) target = $region60
        $region59: #{tpu_custom_call.1} parent=51 // pred_region
          %s555 = sand.u32 %s29, 1
          %s556 = scalar_lea.sflag [#allocation9], %s555
          %s557 = sand.u32 %s135, 1
          %s558 = smul.addr %s557, 8
          %s559 = scalar_lea.vmem [#allocation8], %s558
          %560 = dma.done %s556, 128
        $region60: #{tpu_custom_call.1} parent=51 // pred_fallthru
          _
        // Predicated region
        $region61: #{tpu_custom_call.1} parent=51 // pred_check
          %p561 = pneg %p178
        $region62: #{tpu_custom_call.1} parent=51 // pred_check_branch
          %563 = sbr.rel (%p561) target = $region64
        $region63: #{tpu_custom_call.1} parent=51 // pred_region
          %s564 = sand.u32 %s29, 1
          %s565 = scalar_lea.sflag [#allocation9], %s564
          %s566 = sand.u32 %s163, 1
          %s567 = smul.addr %s566, 8
          %s568 = scalar_lea.vmem [#allocation10], %s567
          %569 = dma.done %s565, 128
        $region64: #{tpu_custom_call.1} parent=51 // pred_fallthru
          _
      $region52: #{tpu_custom_call.1} parent=5 // pred_fallthru
        _
    $region6: #{tpu_custom_call.1} parent=1 // loop_footer
      %s27 = sadd.s32 1, %s23
    $region7: #{tpu_custom_call.1} parent=1 // loop_footer_branch
      %22 = sbr.rel target = $region3
    $region8: #{tpu_custom_call.1} parent=1 // loop_exit
      _
    %570 = vsyncpa [#allocation3], 1
    %s571 = scalar_lea.sflag [#allocation3], 1
    %572 = vsyncpa %s571, 1
    %573 = vsyncpa [#allocation6], 1
    %s574 = scalar_lea.sflag [#allocation6], 1
    %575 = vsyncpa %s574, 1
    %576 = vsyncpa [#allocation4], 1
    %s577 = scalar_lea.sflag [#allocation4], 1
    %578 = vsyncpa %s577, 1
    %579 = vsyncpa [#allocation9], 1
    %s580 = scalar_lea.sflag [#allocation9], 1
    %581 = vsyncpa %s580, 1

</llo_original>
